<compile_context>
chip_gen: v7x
topology: tpu7x:2x2x1
jax: 0.10.0
libtpu: 0.0.40
codegen_flags: <defaults>
</compile_context>

<pallas_src>
import math

import jax
import jax.numpy as jnp
from jax.experimental import pallas as pl
from jax.experimental.pallas import tpu as pltpu


def _sigmoid_kernel(x_ref, o_ref):
    # sigmoid(x) = 0.5 * (1 + tanh(x / 2)): a single EUP op per element.
    x = x_ref[...].astype(jnp.float32)
    o_ref[...] = (0.5 * jnp.tanh(0.5 * x) + 0.5).astype(o_ref.dtype)


_LANE_CANDIDATES = (2048, 1024, 512, 256, 128)   # lane-dense last-dim widths
_MIB = 1024 * 1024


def _sublane(dtype) -> int:
    """Native sublane multiple: 8 for 4-byte, 16 for 2-byte, 32 for 1-byte."""
    return max(8, 32 // jnp.dtype(dtype).itemsize)


def _tpu_tuning():
    """Return (max_block_bytes, min_grid_steps) per TPU generation."""
    try:
        kind = jax.devices()[0].device_kind.lower()
    except Exception:
        kind = ""
    if "v5" in kind:      # v5e: 16 MiB default scoped VMEM -> keep 4x block small
        return 3 * _MIB, 1
    if "v6" in kind:      # v6e: large VMEM headroom, single TC
        return 6 * _MIB, 1
    if "v7" in kind:      # v7x: 64 MiB physical VMEM, 2 TCs per chip
        return 6 * _MIB, 2
    return 3 * _MIB, 1    # unknown generation: conservative


def _choose_lanes(total: int, sublane: int) -> int:
    """Widest lane width that divides `total` exactly (prefer >= 1 sublane group
    of rows); otherwise the width requiring the least tail padding."""
    exact = [l for l in _LANE_CANDIDATES if total % l == 0]
    for l in exact:
        if total // l >= sublane:
            return l
    if exact:
        return exact[0]
    return min(_LANE_CANDIDATES, key=lambda l: ((-total) % l, -l))


def _choose_block_rows(rows, lanes, itemsize, sublane, max_block_bytes, min_steps):
    row_bytes = lanes * itemsize
    max_rows = max(sublane, (max_block_bytes // row_bytes) // sublane * sublane)
    # Enough grid steps to (a) respect the per-generation block cap and
    # (b) give v7x's two TensorCores something to shard.
    steps = max(min_steps, pl.cdiv(rows, max_rows))
    if steps > 1 and min_steps > 1 and steps % 2:
        steps += 1                      # even step count balances the two TCs
    if steps <= 1:
        return rows                     # single block == full array dims (valid)
    block_rows = pl.cdiv(pl.cdiv(rows, steps), sublane) * sublane
    return max(sublane, min(block_rows, max_rows))


def tudui3_forward(x, *, min_pallas_elems=1024):
    """Pallas implementation of Tudui3.forward: sigmoid(x). x is NCHW."""
    orig_shape = x.shape
    total = math.prod(orig_shape)
    if total < min_pallas_elems:
        # Below one full (sublane, 128) tile the pallas_call overhead dominates.
        return jax.nn.sigmoid(x)

    itemsize = jnp.dtype(x.dtype).itemsize
    sub = _sublane(x.dtype)
    max_block_bytes, min_steps = _tpu_tuning()

    lanes = _choose_lanes(total, sub)
    rows = pl.cdiv(total, lanes)
    block_rows = _choose_block_rows(rows, lanes, itemsize, sub,
                                    max_block_bytes, min_steps)
    grid = (pl.cdiv(rows, block_rows),)

    flat = x.reshape(-1)
    padded_total = rows * lanes
    if padded_total != total:
        # Only a sub-`lanes` tail pad; skipped entirely whenever a lane width
        # divides the element count exactly (the common case).
        flat = jnp.pad(flat, (0, padded_total - total))
    x2d = flat.reshape(rows, lanes)

    block_bytes = block_rows * lanes * itemsize
    vmem_limit = int(min(max(4 * block_bytes + 4 * _MIB, 16 * _MIB), 32 * _MIB))

    out2d = pl.pallas_call(
        _sigmoid_kernel,
        out_shape=jax.ShapeDtypeStruct((rows, lanes), x.dtype),
        grid=grid,
        in_specs=[pl.BlockSpec((block_rows, lanes), lambda i: (i, 0))],
        out_specs=pl.BlockSpec((block_rows, lanes), lambda i: (i, 0)),
        compiler_params=pltpu.CompilerParams(
            dimension_semantics=("parallel",),
            vmem_limit_bytes=vmem_limit,
        ),
    )(x2d)

    out = out2d.reshape(-1)
    if padded_total != total:
        out = out[:total]
    return out.reshape(orig_shape)


if __name__ == "__main__":
    key = jax.random.PRNGKey(0)
    # Small NCHW input consistent with the module (batch=2, channels=4, 16x16).
    x = jax.random.normal(key, (2, 4, 16, 16), dtype=jnp.float32)

    out = tudui3_forward(x)
    out = jax.block_until_ready(out)

    # Sanity check against plain JAX reference.
    ref = jax.nn.sigmoid(x)
    assert out.shape == x.shape
    assert jnp.allclose(out, ref, atol=1e-6), "mismatch vs reference sigmoid"

    print("KERNEL_OK")
</pallas_src>

<mosaic_0001>
module attributes {stable_mosaic.version = 11 : i64} {
  func.func @_sigmoid_kernel(%arg0: i32, %arg1: memref<8x256xf32, #tpu.memory_space<vmem>>, %arg2: memref<8x256xf32, #tpu.memory_space<vmem>>) attributes {dimension_semantics = [#tpu.dimension_semantics<parallel>], iteration_bounds = array<i64: 1>, scalar_prefetch = 0 : i64, scratch_operands = 0 : i64, tpu.core_type = #tpu.core_type<tc>, window_params = [{transform_indices = @transform_0, window_bounds = array<i64: 8, 256>}, {transform_indices = @transform_1, window_bounds = array<i64: 8, 256>}]} {
    %c0 = arith.constant 0 : index
    %c0_0 = arith.constant 0 : index
    %0 = vector.load %arg1[%c0, %c0_0] : memref<8x256xf32, #tpu.memory_space<vmem>>, vector<8x256xf32>
    %cst = arith.constant 5.000000e-01 : f32
    %1 = vector.broadcast %cst : f32 to vector<8x256xf32>
    %2 = arith.mulf %1, %0 : vector<8x256xf32>
    %3 = math.tanh %2 : vector<8x256xf32>
    %cst_1 = arith.constant 5.000000e-01 : f32
    %4 = vector.broadcast %cst_1 : f32 to vector<8x256xf32>
    %5 = arith.mulf %4, %3 : vector<8x256xf32>
    %cst_2 = arith.constant 5.000000e-01 : f32
    %6 = vector.broadcast %cst_2 : f32 to vector<8x256xf32>
    %7 = arith.addf %5, %6 : vector<8x256xf32>
    %c0_3 = arith.constant 0 : index
    %c0_4 = arith.constant 0 : index
    %8 = vector.load %arg2[%c0_3, %c0_4] : memref<8x256xf32, #tpu.memory_space<vmem>>, vector<8x256xf32>
    tpu.vector_store %arg2[%c0_3, %c0_4], %7 {strides = array<i32>} : memref<8x256xf32, #tpu.memory_space<vmem>>, vector<8x256xf32>,
    return
  }
  func.func @transform_0(%arg0: i32) -> (i32, i32) {
    %c0_i32 = arith.constant 0 : i32
    %c0_i32_0 = arith.constant 0 : i32
    return %arg0, %c0_i32 : i32, i32
  }
  func.func @transform_1(%arg0: i32) -> (i32, i32) {
    %c0_i32 = arith.constant 0 : i32
    %c0_i32_0 = arith.constant 0 : i32
    return %arg0, %c0_i32 : i32, i32
  }
}

</mosaic_0001>

<llo_original>
// kernel: tpu_custom_call.1
$region0: #{tpu_custom_call.1}
  #allocation0 [shape = 'u32[]', space=smem, size = 0x4, offset = 0x4, fixed_abs, tag = 'smem constant byte address 0x4 - core index']
  #allocation1 [shape = 'u32[144,128]{1,0:T(1,128)}', space=vmem, size = 0x12000, scoped, tag = 'internal scratch']
  %s0 = inlined_call_operand.hbm [shape: f32[8,256], index: 0, kind: input, shape index: {}]
  %s1 = inlined_call_operand.hbm [shape: f32[8,256], index: 1, kind: output, shape index: {}]
  %s2 = sld [smem:[#allocation0]]
  $region18: #{tpu_custom_call.1} parent=0
    _
  %s4 = ssub.s32 1, %s2
  %s5 = scalar_select 0, %s4, %s2
  $region1: #{tpu_custom_call.1} parent=0
    #allocation2 [shape = 'u8[8192]{0}', space=vmem, size = 0x2000, scoped, tag = 'input window, operand 0, single buffered']
    #allocation3 [shape = 's32[1]{0}', space=sflag, size = 0x4, scoped, tag = 'scoped memory for tpu_custom_call.1']
    #allocation4 [shape = 's32[1]{0}', space=sflag, size = 0x4, scoped, tag = 'scoped memory for tpu_custom_call.1']
    #allocation5 [shape = 'u8[8192]{0}', space=vmem, size = 0x2000, scoped, tag = 'output window, operand 0, single buffered']
    %6 = vsyncpa [#allocation3], 0
    %7 = vsyncpa [#allocation4], 0
    // Predicated region
    $region2: #{tpu_custom_call.1} parent=1 // pred_check
      _
    $region3: #{tpu_custom_call.1} parent=1 // pred_check_branch
      %9 = sbr.rel (0) target = $region5
    $region4: #{tpu_custom_call.1} parent=1 // pred_region
      %s11 = ssub.s32 256, 256
      %12 = vsyncadd [#allocation3], %s11
      %s14 = sshll.u32 [#allocation2], 4
      %s15 = int_to_ptr.vmem [resolvable:$true] %s14
      %17 = dma.hbm_to_vmem [thread:$0]  %s0, 256, %s15, [#allocation3]
    $region5: #{tpu_custom_call.1} parent=1 // pred_fallthru
      _
    // Predicated region
    $region6: #{tpu_custom_call.1} parent=1 // pred_check
      _
    $region7: #{tpu_custom_call.1} parent=1 // pred_check_branch
      %19 = sbr.rel (0) target = $region9
    $region8: #{tpu_custom_call.1} parent=1 // pred_region
      %20 = dma.done [#allocation3], 256
    $region9: #{tpu_custom_call.1} parent=1 // pred_fallthru
      _
    %v21 = vld [vmem:[#allocation2] sm:$0xff]
    %v22 = vld [vmem:[#allocation2 + $0x8] sm:$0xff]
    %v23 = vmul.f32 %v21, 0.5
    %v24 = vmul.f32 %v22, 0.5
    %v25 = vtanh.pop %v23
    %v26 = vtanh.pop %v24
    %v27 = vmul.f32 %v25, 0.5
    %v28 = vmul.f32 %v26, 0.5
    %v29 = vadd.f32 %v27, 0.5
    %v30 = vadd.f32 %v28, 0.5
    %31 = vst [vmem:[#allocation5] sm:$0xff] %v29
    %32 = vst [vmem:[#allocation5 + $0x8] sm:$0xff] %v30
    // Predicated region
    $region10: #{tpu_custom_call.1} parent=1 // pred_check
      _
    $region11: #{tpu_custom_call.1} parent=1 // pred_check_branch
      %34 = sbr.rel (0) target = $region13
    $region12: #{tpu_custom_call.1} parent=1 // pred_region
      %s36 = ssub.s32 256, 256
      %37 = vsyncadd [#allocation4], %s36
      %s39 = sshll.u32 [#allocation5], 4
      %s40 = int_to_ptr.vmem [resolvable:$true] %s39
      %42 = dma.vmem_to_hbm [thread:$0]  %s40, 256, %s1, [#allocation4]
    $region13: #{tpu_custom_call.1} parent=1 // pred_fallthru
      _
    // Predicated region
    $region14: #{tpu_custom_call.1} parent=1 // pred_check
      _
    $region15: #{tpu_custom_call.1} parent=1 // pred_check_branch
      %44 = sbr.rel (0) target = $region17
    $region16: #{tpu_custom_call.1} parent=1 // pred_region
      %45 = dma.done [#allocation4], 256
    $region17: #{tpu_custom_call.1} parent=1 // pred_fallthru
      _
    %46 = vsyncpa [#allocation3], 1
    %47 = vsyncpa [#allocation4], 1

</llo_original>
